<compile_context>
chip_gen: v5e
topology: v5e:2x2
jax: 0.10.0
libtpu: 0.0.40
codegen_flags: <defaults>
</compile_context>

<pallas_src>
import math

import jax
import jax.numpy as jnp
import numpy as np
from jax.experimental import pallas as pl
from jax.experimental.pallas import tpu as pltpu


def _flatten_dma_kernel(x_hbm_ref, o_hbm_ref, sem):
    # Single HBM -> HBM DMA of the whole (already logically flattened)
    # buffer.  No VMEM staging, no tiling, no masked stores.
    copy = pltpu.make_async_copy(x_hbm_ref, o_hbm_ref, sem)
    copy.start()
    copy.wait()


def flatten_layer(x: jax.Array) -> jax.Array:
    """Pallas equivalent of FlattenLayer.forward: x.view(B, -1)."""
    B = x.shape[0]
    D = math.prod(x.shape[1:])
    itemsize = jnp.dtype(x.dtype).itemsize

    # Metadata-only flatten; this alone is the whole op in XLA.  The
    # pallas_call below is the explicit (materialized-copy) kernel form.
    x2 = x.reshape(B, D)

    return pl.pallas_call(
        _flatten_dma_kernel,
        out_shape=jax.ShapeDtypeStruct((B, D), x.dtype),
        # Leave both operands in HBM; the kernel DMAs directly between them.
        in_specs=[pl.BlockSpec(memory_space=pl.ANY)],
        out_specs=pl.BlockSpec(memory_space=pl.ANY),
        scratch_shapes=[pltpu.SemaphoreType.DMA],
        # Pure memory traffic: one full read + one full write, zero FLOPs.
        cost_estimate=pl.CostEstimate(
            flops=0,
            transcendentals=0,
            bytes_accessed=2 * B * D * itemsize,
        ),
    )(x2)


if __name__ == "__main__":
    key = jax.random.PRNGKey(0)
    x = jax.random.normal(key, (2, 4, 16, 16), dtype=jnp.float32)

    # Reference: exact torch .view(B, -1) semantics.
    y_ref = np.asarray(x).reshape(x.shape[0], -1)

    flatten_jit = jax.jit(flatten_layer)
    y = flatten_jit(x)
    jax.block_until_ready(y)

    assert y.shape == (2, 4 * 16 * 16), y.shape
    assert y.dtype == jnp.float32
    assert np.array_equal(np.asarray(y), y_ref), "mismatch vs reference flatten"

    print("KERNEL_OK")
</pallas_src>

<mosaic_0001>
module attributes {stable_mosaic.version = 11 : i64} {
  func.func @_flatten_dma_kernel(%arg0: memref<2x1024xf32, #tpu.memory_space<any>>, %arg1: memref<2x1024xf32, #tpu.memory_space<any>>, %arg2: memref<!tpu.dma_semaphore, #tpu.memory_space<semaphore_mem>>) attributes {dimension_semantics = [], scalar_prefetch = 0 : i64, scratch_operands = 1 : i64, tpu.core_type = #tpu.core_type<tc>} {
    tpu.enqueue_dma source(%arg0 : memref<2x1024xf32, #tpu.memory_space<any>>) target(%arg1 : memref<2x1024xf32, #tpu.memory_space<any>>) target_semaphore(%arg2 : memref<!tpu.dma_semaphore, #tpu.memory_space<semaphore_mem>>)
    tpu.wait_dma2 semaphore(%arg2 : memref<!tpu.dma_semaphore, #tpu.memory_space<semaphore_mem>>) src(%arg0 : memref<2x1024xf32, #tpu.memory_space<any>>) dst(%arg1 : memref<2x1024xf32, #tpu.memory_space<any>>)
    return
  }
}

</mosaic_0001>

<llo_original>
// kernel: flatten_layer.1
$region0: #{flatten_layer.1}
  #allocation0 [shape = 'u32[]', space=smem, size = 0x4, offset = 0x4, fixed_abs, tag = 'smem constant byte address 0x4 - core index']
  #allocation1 [shape = 'u32[72,128]{1,0:T(1,128)}', space=vmem, size = 0x9000, scoped, tag = 'internal scratch']
  #allocation2 [shape = 's32[1]{0}', space=sflag, size = 0x4, scoped, tag = 'scratch operand']
  #allocation3 [shape = 's32[]', space=sflag, size = 0x4, offset = 0, fixed_abs, tag = 'sflag constant byte address 0x0 - dummy sync flag']
  #allocation4 [shape = 's32[]', space=sflag, size = 0x4, offset = 0, fixed_abs, tag = 'sflag constant byte address 0x0 - dummy sync flag']
  #allocation5 [shape = 'u32[]', space=smem, size = 0x4, offset = 0x44, fixed_abs, tag = 'smem constant byte address 0x44 - assertion arg 0']
  #allocation6 [shape = 'u32[]', space=smem, size = 0x4, offset = 0x48, fixed_abs, tag = 'smem constant byte address 0x48 - assertion arg 1']
  %s0 = inlined_call_operand.vmem [shape: f32[2,1024], index: 0, kind: input, shape index: {}]
  %s1 = inlined_call_operand.hbm [shape: f32[2,1024], index: 1, kind: output, shape index: {}]
  %s2 = sld [smem:[#allocation0]]
  $region6: #{flatten_layer.1} parent=0
    _
  %s4 = ssub.s32 1, %s2
  %s5 = scalar_select 0, %s4, %s2
  // Predicated region
  $region2: #{flatten_layer.1} parent=0 // pred_check
    _
  $region3: #{flatten_layer.1} parent=0 // pred_check_branch
    %7 = sbr.rel target = $region5
  $region4: #{flatten_layer.1} parent=0 // pred_region
    %8 = sst [smem:[#allocation5]] [#allocation4]
    %9 = sst [smem:[#allocation6]] [#allocation3]
  $region5: #{flatten_layer.1} parent=0 // pred_fallthru
    _
  %11 = shalt.err (0)
  %s13 = sshll.u32 %s0, 4
  %s14 = int_to_ptr.vmem [resolvable:$true] %s13
  %s15 = sshll.u32 %s1, 4
  %s16 = int_to_ptr.hbm [resolvable:$true] %s15
  %18 = dma.vmem_to_hbm [thread:$0]  %s14, 256, %s16, [#allocation2]
  %s19 = smul.u32 2, 1
  %s20 = smul.u32 %s19, 8
  %s21 = sshll.u32 %s20, 4
  %22 = dma.done [#allocation2], %s21
  %23 = vsyncmov [#allocation2]
  %s24 = vpop.sfrf %23
  %p25 = scmp.eq.s32.totalorder %s24, 0
  %p26 = pneg %p25
  %28 = shalt.err (%p26)

</llo_original>
